<compile_context>
chip_gen: v6e
topology: v6e:2x2x1
jax: 0.10.0
libtpu: 0.0.40
codegen_flags: <defaults>
</compile_context>

<pallas_src>
import functools

import jax
import jax.numpy as jnp
from jax.experimental import pallas as pl
from jax.experimental.pallas import tpu as pltpu


def _round_up(a: int, b: int) -> int:
    return ((a + b - 1) // b) * b


def _tap_kernel(x_ref, o_ref, acc_ref, *, inv_t, t_total, t_tile, mask_tail):
    """x_ref: (rows_tile, t_tile) tile of the (B*C, T) slab.
    o_ref: (rows_tile, 1) per-row mean (written only on the last T step).
    acc_ref: (rows_tile, 1) float32 accumulator scratch (resident across the T axis).
    """
    t_idx = pl.program_id(1)

    @pl.when(t_idx == 0)
    def _init():
        acc_ref[...] = jnp.zeros_like(acc_ref)

    x = x_ref[...].astype(jnp.float32)  # (rows_tile, t_tile)

    if mask_tail:
        # Zero out-of-bounds frames in the last (partial) T block so they do not
        # pollute the running sum.  frame index = t_idx * t_tile + lane.
        lane = jax.lax.broadcasted_iota(jnp.int32, x.shape, 1)
        frame = t_idx * t_tile + lane
        x = jnp.where(frame < t_total, x, 0.0)

    acc_ref[...] += jnp.sum(x, axis=-1, keepdims=True)  # (rows_tile, 1)

    @pl.when(t_idx == pl.num_programs(1) - 1)
    def _finalize():
        # Scale by 1/T (full T, not the tile size) only once, in the epilogue.
        o_ref[...] = (acc_ref[...] * inv_t).astype(o_ref.dtype)


def temporal_average_pooling(x, *, rows_tile: int = 512, t_tile: int = 2048):
    """x: (B, C, T) -> (B, C), mean over the last (frames) axis."""
    B, C, T = x.shape
    BC = B * C
    x2 = x.reshape(BC, T)  # row-major view, no data movement

    # ---- Row (B*C) tiling: second-to-last block dim must be a multiple of 8. ----
    if BC <= rows_tile:
        rt = _round_up(max(BC, 1), 8)
    else:
        rt = rows_tile  # default 512, a multiple of 8
    n_row_blocks = pl.cdiv(BC, rt)
    bc_pad = n_row_blocks * rt  # output is sized to full blocks; extra rows sliced off

    # ---- Frame (T) tiling: last block dim must be a multiple of 128 or the full T. ----
    if T <= t_tile:
        tt = T
    else:
        tt = t_tile  # default 2048, a multiple of 128
    n_t_blocks = pl.cdiv(T, tt)

    itemsize = jnp.dtype(x.dtype).itemsize
    kernel = functools.partial(
        _tap_kernel,
        inv_t=1.0 / T,
        t_total=T,
        t_tile=tt,
        mask_tail=(T % tt) != 0,
    )

    out = pl.pallas_call(
        kernel,
        out_shape=jax.ShapeDtypeStruct((bc_pad, 1), x.dtype),
        grid_spec=pltpu.PrefetchScalarGridSpec(
            num_scalar_prefetch=0,
            grid=(n_row_blocks, n_t_blocks),  # reduction (T) axis last
            in_specs=[pl.BlockSpec((rt, tt), lambda r, t: (r, t))],
            out_specs=pl.BlockSpec((rt, 1), lambda r, t: (r, 0)),
            scratch_shapes=[pltpu.VMEM((rt, 1), jnp.float32)],
        ),
        compiler_params=pltpu.CompilerParams(
            # "parallel" row axis -> shards across the 2 TCs on v7x; neutral on v5e/v6e.
            dimension_semantics=("parallel", "arbitrary"),
            # Explicit scoped-VMEM budget: default tiles need ~9 MiB; 32 MiB is safe on
            # v5e (128 MiB phys), v6e (128 MiB phys) and v7x (64 MiB phys).
            vmem_limit_bytes=32 * 1024 * 1024,
        ),
        cost_estimate=pl.CostEstimate(
            flops=BC * T,
            transcendentals=0,
            bytes_accessed=BC * T * itemsize + BC * itemsize,
        ),
    )(x2)

    # Drop padded rows and restore the (B, C) shape (tiny tensor; negligible cost).
    return out[:BC, 0].reshape(B, C)


if __name__ == "__main__":
    key = jax.random.PRNGKey(0)

    # Shapes consistent with the module's forward: (#batch, channels, frames).
    B, C, T = 2, 4, 16
    x = jax.random.normal(key, (B, C, T), dtype=jnp.float32)

    y = temporal_average_pooling(x)
    y = jax.block_until_ready(y)

    y_ref = jnp.mean(x, axis=-1)
    assert y.shape == (B, C), f"bad shape {y.shape}"
    assert jnp.allclose(y, y_ref, atol=1e-5, rtol=1e-5), "mismatch vs reference"

    # Second check: exercise row/T tiling and the non-divisible-T tail mask.
    B2, C2, T2 = 3, 80, 300
    x2 = jax.random.normal(jax.random.PRNGKey(1), (B2, C2, T2), dtype=jnp.float32)
    y2 = jax.block_until_ready(
        temporal_average_pooling(x2, rows_tile=64, t_tile=128)
    )
    y2_ref = jnp.mean(x2, axis=-1)
    assert y2.shape == (B2, C2), f"bad shape {y2.shape}"
    assert jnp.allclose(y2, y2_ref, atol=1e-5, rtol=1e-5), "mismatch vs reference (tiled)"

    print("KERNEL_OK")
</pallas_src>

<mosaic_0001>
module attributes {stable_mosaic.version = 11 : i64} {
  func.func @_tap_kernel(%arg0: i32, %arg1: i32, %arg2: memref<8x16xf32, #tpu.memory_space<vmem>>, %arg3: memref<8x1xf32, #tpu.memory_space<vmem>>, %arg4: memref<8x1xf32, #tpu.memory_space<vmem>>) attributes {dimension_semantics = [#tpu.dimension_semantics<parallel>, #tpu.dimension_semantics<arbitrary>], iteration_bounds = array<i64: 1, 1>, scalar_prefetch = 0 : i64, scratch_operands = 1 : i64, tpu.core_type = #tpu.core_type<tc>, window_params = [{transform_indices = @transform_0, window_bounds = array<i64: 8, 16>}, {transform_indices = @transform_1, window_bounds = array<i64: 8, 1>}]} {
    %c0_i32 = arith.constant 0 : i32
    %0 = arith.cmpi eq, %arg1, %c0_i32 : i32
    %1 = arith.extui %0 : i1 to i32
    %c0_i32_0 = arith.constant 0 : i32
    %2 = arith.cmpi ne, %1, %c0_i32_0 : i32
    scf.if %2 {
      %cst_8 = arith.constant 0.000000e+00 : f32
      %12 = vector.broadcast %cst_8 : f32 to vector<8x1xf32>
      %c0_9 = arith.constant 0 : index
      %c0_10 = arith.constant 0 : index
      %13 = vector.load %arg4[%c0_9, %c0_10] : memref<8x1xf32, #tpu.memory_space<vmem>>, vector<8x1xf32>
      tpu.vector_store %arg4[%c0_9, %c0_10], %12 {strides = array<i32>} : memref<8x1xf32, #tpu.memory_space<vmem>>, vector<8x1xf32>,
    } else {
    }
    %c0 = arith.constant 0 : index
    %c0_1 = arith.constant 0 : index
    %3 = vector.load %arg2[%c0, %c0_1] : memref<8x16xf32, #tpu.memory_space<vmem>>, vector<8x16xf32>
    %c0_2 = arith.constant 0 : index
    %c0_3 = arith.constant 0 : index
    %4 = vector.load %arg4[%c0_2, %c0_3] : memref<8x1xf32, #tpu.memory_space<vmem>>, vector<8x1xf32>
    %cst = arith.constant dense<0.000000e+00> : vector<8xf32>
    %5 = vector.multi_reduction <add>, %3, %cst [1] : vector<8x16xf32> to vector<8xf32>
    %6 = vector.shape_cast %5 : vector<8xf32> to vector<8x1xf32>
    %7 = arith.addf %4, %6 : vector<8x1xf32>
    %c0_4 = arith.constant 0 : index
    %c0_5 = arith.constant 0 : index
    %8 = vector.load %arg4[%c0_4, %c0_5] : memref<8x1xf32, #tpu.memory_space<vmem>>, vector<8x1xf32>
    tpu.vector_store %arg4[%c0_4, %c0_5], %7 {strides = array<i32>} : memref<8x1xf32, #tpu.memory_space<vmem>>, vector<8x1xf32>,
    %c0_i32_6 = arith.constant 0 : i32
    %9 = arith.cmpi eq, %arg1, %c0_i32_6 : i32
    %10 = arith.extui %9 : i1 to i32
    %c0_i32_7 = arith.constant 0 : i32
    %11 = arith.cmpi ne, %10, %c0_i32_7 : i32
    scf.if %11 {
      %c0_8 = arith.constant 0 : index
      %c0_9 = arith.constant 0 : index
      %12 = vector.load %arg4[%c0_8, %c0_9] : memref<8x1xf32, #tpu.memory_space<vmem>>, vector<8x1xf32>
      %cst_10 = arith.constant 6.250000e-02 : f32
      %13 = vector.broadcast %cst_10 : f32 to vector<8x1xf32>
      %14 = arith.mulf %12, %13 : vector<8x1xf32>
      %c0_11 = arith.constant 0 : index
      %c0_12 = arith.constant 0 : index
      %15 = vector.load %arg3[%c0_11, %c0_12] : memref<8x1xf32, #tpu.memory_space<vmem>>, vector<8x1xf32>
      tpu.vector_store %arg3[%c0_11, %c0_12], %14 {strides = array<i32>} : memref<8x1xf32, #tpu.memory_space<vmem>>, vector<8x1xf32>,
    } else {
    }
    return
  }
  func.func @transform_0(%arg0: i32, %arg1: i32) -> (i32, i32) {
    %c0_i32 = arith.constant 0 : i32
    return %arg0, %arg1 : i32, i32
  }
  func.func @transform_1(%arg0: i32, %arg1: i32) -> (i32, i32) {
    %c0_i32 = arith.constant 0 : i32
    %c0_i32_0 = arith.constant 0 : i32
    return %arg0, %c0_i32 : i32, i32
  }
}

</mosaic_0001>

<llo_original>
// kernel: tpu_custom_call.1
$region0: #{tpu_custom_call.1}
  #allocation0 [shape = 'u32[]', space=smem, size = 0x4, offset = 0x4, fixed_abs, tag = 'smem constant byte address 0x4 - core index']
  #allocation1 [shape = 'u32[144,128]{1,0:T(1,128)}', space=vmem, size = 0x12000, scoped, tag = 'internal scratch']
  #allocation2 [shape = 'f32[8,1]{1,0:T(8,128)}', space=vmem, size = 0x1000, scoped, tag = 'scratch operand']
  %s0 = inlined_call_operand.hbm [shape: f32[8,16], index: 0, kind: input, shape index: {}]
  %s1 = inlined_call_operand.vmem [shape: f32[8,1], index: 1, kind: output, shape index: {}]
  %s2 = sld [smem:[#allocation0]]
  $region26: #{tpu_custom_call.1} parent=0
    _
  %s4 = ssub.s32 1, %s2
  %s5 = scalar_select 0, %s4, %s2
  $region1: #{tpu_custom_call.1} parent=0
    #allocation3 [shape = 'u8[4096]{0}', space=vmem, size = 0x1000, scoped, tag = 'input window, operand 0, single buffered']
    #allocation4 [shape = 's32[1]{0}', space=sflag, size = 0x4, scoped, tag = 'scoped memory for tpu_custom_call.1']
    %6 = vsyncpa [#allocation4], 0
    // Predicated region
    $region2: #{tpu_custom_call.1} parent=1 // pred_check
      _
    $region3: #{tpu_custom_call.1} parent=1 // pred_check_branch
      %8 = sbr.rel (0) target = $region5
    $region4: #{tpu_custom_call.1} parent=1 // pred_region
      %s10 = ssub.s32 128, 128
      %11 = vsyncadd [#allocation4], %s10
      %s13 = sshll.u32 [#allocation3], 4
      %s14 = int_to_ptr.vmem [resolvable:$true] %s13
      %16 = dma.hbm_to_vmem [thread:$0]  %s0, 128, %s14, [#allocation4]
    $region5: #{tpu_custom_call.1} parent=1 // pred_fallthru
      _
    // Predicated region
    $region6: #{tpu_custom_call.1} parent=1 // pred_check
      _
    $region7: #{tpu_custom_call.1} parent=1 // pred_check_branch
      %18 = sbr.rel (0) target = $region9
    $region8: #{tpu_custom_call.1} parent=1 // pred_region
      %19 = dma.done [#allocation4], 128
    $region9: #{tpu_custom_call.1} parent=1 // pred_fallthru
      _
    %p20 = scmp.eq.s32.totalorder 0, 0
    // Predicated region
    $region10: #{tpu_custom_call.1} parent=1 // pred_check
      %p21 = pneg %p20
    $region11: #{tpu_custom_call.1} parent=1 // pred_check_branch
      %23 = sbr.rel (%p21) target = $region13
    $region12: #{tpu_custom_call.1} parent=1 // pred_region
      %vm24 = vcmask 7168
      %25 = vst.msk [vmem:[#allocation2] sm:$0xff] %vm24, 0.0
    $region13: #{tpu_custom_call.1} parent=1 // pred_fallthru
      _
    %v26 = vld [vmem:[#allocation3] sm:$0xff]
    %v27 = vld [vmem:[#allocation2] sm:$0xff]
    %vm28 = vcmask 130048
    %v29 = vsel %vm28, %v26, 0.0
    %30 = vadd.xlane.f32.xlu0 %v29
    %v31 = vpop.xlane.xlu0 %30
    %v32 = vadd.f32 %v27, %v31
    %vm33 = vcmask 7168
    %34 = vst.msk [vmem:[#allocation2] sm:$0xff] %vm33, %v32
    // Predicated region
    $region14: #{tpu_custom_call.1} parent=1 // pred_check
      %p35 = pneg %p20
    $region15: #{tpu_custom_call.1} parent=1 // pred_check_branch
      %37 = sbr.rel (%p35) target = $region17
    $region16: #{tpu_custom_call.1} parent=1 // pred_region
      %v38 = vld [vmem:[#allocation2] sm:$0xff]
      %v39 = vmul.f32 %v38, 0.0625
      %40 = vst.msk [vmem:[%s1] sm:$0xff] %vm33, %v39
    $region17: #{tpu_custom_call.1} parent=1 // pred_fallthru
      _
    // Predicated region
    $region18: #{tpu_custom_call.1} parent=1 // pred_check
      _
    $region19: #{tpu_custom_call.1} parent=1 // pred_check_branch
      %42 = sbr.rel (0) target = $region21
    $region20: #{tpu_custom_call.1} parent=1 // pred_region
      _
    $region21: #{tpu_custom_call.1} parent=1 // pred_fallthru
      _
    // Predicated region
    $region22: #{tpu_custom_call.1} parent=1 // pred_check
      _
    $region23: #{tpu_custom_call.1} parent=1 // pred_check_branch
      %44 = sbr.rel (0) target = $region25
    $region24: #{tpu_custom_call.1} parent=1 // pred_region
      _
    $region25: #{tpu_custom_call.1} parent=1 // pred_fallthru
      _
    %45 = vsyncpa [#allocation4], 1

</llo_original>
